<compile_context>
chip_gen: v7x
topology: tpu7x:2x2x1
jax: 0.10.0
libtpu: 0.0.40
codegen_flags: <defaults>
</compile_context>

<pallas_src>
import functools

import jax
import jax.numpy as jnp
from jax import lax
from jax.experimental import pallas as pl
from jax.experimental.pallas import tpu as pltpu


def _mhsa_kernel(heads_per_block,
                 q_ref, k_ref, v_ref, wo_ref, bo_ref,
                 out_ref, attn_ref, acc_ref):
    h = pl.program_id(2)

    q = q_ref[0]          # (hpb, TQ, hd)   already scaled by 1/sqrt(hd)
    k = k_ref[0]          # (hpb, S,  hd)
    v = v_ref[0]          # (hpb, S,  hd)

    # Scores: batched contraction over head_dim (no materialized k.T).
    s = lax.dot_general(q, k,
                        dimension_numbers=(((2,), (2,)), ((0,), (0,))),
                        preferred_element_type=jnp.float32)        # (hpb, TQ, S)

    # Numerically-stable softmax in f32; normalisation via EUP approximate
    # reciprocal plus one Newton refinement (keeps the divide off the VALU).
    m = jnp.max(s, axis=-1, keepdims=True)
    e = jnp.exp(s - m)
    denom = jnp.sum(e, axis=-1, keepdims=True)
    inv = pl.reciprocal(denom, approx=True)
    inv = inv * (2.0 - denom * inv)
    w = e * inv                                                    # (hpb, TQ, S) f32

    attn_ref[0] = w.astype(attn_ref.dtype)

    # Attention output for this head block.
    pv = lax.dot_general(w.astype(v.dtype), v,
                         dimension_numbers=(((2,), (1,)), ((0,), (0,))),
                         preferred_element_type=jnp.float32)       # (hpb, TQ, hd)

    # Output projection, K-tiled over head blocks.  wo_ref is the full
    # resident (nh, hd, H) slab; select this head block's rows in VMEM.
    row0 = pl.multiple_of(h * heads_per_block, heads_per_block)
    wo_blk = wo_ref[pl.ds(row0, heads_per_block)]                  # (hpb, hd, H)

    contrib = lax.dot_general(pv.astype(wo_blk.dtype), wo_blk,
                              dimension_numbers=(((2,), (1,)), ((0,), (0,))),
                              preferred_element_type=jnp.float32)  # (hpb, TQ, H)
    contrib = jnp.sum(contrib, axis=0)                             # (TQ, H)

    @pl.when(h == 0)
    def _init():
        # Fold the output bias into the accumulator init.
        acc_ref[...] = jnp.broadcast_to(bo_ref[...], acc_ref.shape)

    acc_ref[...] += contrib

    @pl.when(h == pl.num_programs(2) - 1)
    def _finalize():
        out_ref[0] = acc_ref[...].astype(out_ref.dtype)


def multi_head_self_attention(x, params, num_heads, *,
                              q_tile=None,
                              heads_per_block=None,
                              mxu_dtype=jnp.bfloat16,
                              attn_dtype=jnp.float32):
    """x: (B, S, H).  params: PyTorch-convention (out, in) weights / biases.

    Returns (output (B, S, H), attention_weights (B, num_heads, S, S)),
    matching MultiHeadSelfAttention.forward.
    """
    B, S, H = x.shape
    head_dim = H // num_heads
    assert head_dim * num_heads == H, "hidden_size must be divisible by num_heads"

    # ---- fused QKV projection (one (B,S,H) @ (H,3H) matmul, f32 accumulation).
    wqkv = jnp.concatenate([params["wq"], params["wk"], params["wv"]], axis=0)   # (3H, H)
    bqkv = jnp.concatenate([params["bq"], params["bk"], params["bv"]], axis=0)   # (3H,)
    qkv = jnp.dot(x.astype(mxu_dtype), wqkv.T.astype(mxu_dtype),
                  preferred_element_type=jnp.float32) + bqkv                     # (B, S, 3H) f32
    q, k, v = jnp.split(qkv, 3, axis=-1)                                         # (B, S, H) each
    q = q * (float(head_dim) ** -0.5)                                            # fold the 1/sqrt(hd)

    def to_heads(t):   # (B, S, H) -> (B, nh, S, hd)
        return t.reshape(B, S, num_heads, head_dim).transpose(0, 2, 1, 3)

    qh = to_heads(q).astype(mxu_dtype)
    kh = to_heads(k).astype(mxu_dtype)
    vh = to_heads(v).astype(mxu_dtype)

    # Output projection weight: wo is (out, in); out = ao @ wo.T + bo, so pack
    # wo.T row-blocks per head -> (nh, hd, H).  Stays resident in VMEM.
    wo_heads = params["wo"].T.reshape(num_heads, head_dim, H).astype(mxu_dtype)
    bo = params["bo"].reshape(1, H).astype(jnp.float32)

    # ---- head blocking: widen per-step matmul width to ~128-256 lanes.
    if heads_per_block is None:
        heads_per_block = 1
        for cand in range(1, num_heads + 1):
            if num_heads % cand == 0 and cand * head_dim <= 256:
                heads_per_block = cand
    assert num_heads % heads_per_block == 0
    num_h_blocks = num_heads // heads_per_block

    # ---- query tiling.
    if q_tile is None:
        q_tile = min(S, 256)
    if S % q_tile != 0 or (q_tile % 8 != 0 and q_tile != S):
        q_tile = S  # TODO(synk): pad/mask ragged or unaligned query tiles instead.
    num_q = S // q_tile

    # ---- explicit VMEM budget (valid on v7x's 64 MiB as well as v5e/v6e).
    mxu_item = jnp.dtype(mxu_dtype).itemsize
    attn_item = jnp.dtype(attn_dtype).itemsize
    est = (2 * heads_per_block * q_tile * head_dim * mxu_item          # q block (2-buf)
           + 2 * 2 * heads_per_block * S * head_dim * mxu_item         # k, v blocks (2-buf)
           + 2 * q_tile * H * 4                                        # out block (2-buf)
           + 2 * heads_per_block * q_tile * S * attn_item              # attn block (2-buf)
           + num_heads * head_dim * H * mxu_item + H * 4               # resident wo, bo
           + q_tile * H * 4)                                           # acc scratch
    vmem_limit = int(min(max(2 * est, 32 * 1024 * 1024), 64 * 1024 * 1024))

    kernel = functools.partial(_mhsa_kernel, heads_per_block)

    out, attn = pl.pallas_call(
        kernel,
        out_shape=(
            jax.ShapeDtypeStruct((B, S, H), x.dtype),
            jax.ShapeDtypeStruct((B, num_heads, S, S), attn_dtype),
        ),
        grid_spec=pltpu.PrefetchScalarGridSpec(
            num_scalar_prefetch=0,
            grid=(B, num_q, num_h_blocks),
            in_specs=[
                pl.BlockSpec((1, heads_per_block, q_tile, head_dim),
                             lambda b, qi, h: (b, h, qi, 0)),            # Q tile
                pl.BlockSpec((1, heads_per_block, S, head_dim),
                             lambda b, qi, h: (b, h, 0, 0)),             # K (full seq)
                pl.BlockSpec((1, heads_per_block, S, head_dim),
                             lambda b, qi, h: (b, h, 0, 0)),             # V (full seq)
                pl.BlockSpec((num_heads, head_dim, H),
                             lambda b, qi, h: (0, 0, 0)),                # wo slab (resident)
                pl.BlockSpec((1, H), lambda b, qi, h: (0, 0)),           # bo (resident)
            ],
            out_specs=[
                pl.BlockSpec((1, q_tile, H), lambda b, qi, h: (b, qi, 0)),
                pl.BlockSpec((1, heads_per_block, q_tile, S),
                             lambda b, qi, h: (b, h, qi, 0)),
            ],
            scratch_shapes=[pltpu.VMEM((q_tile, H), jnp.float32)],
        ),
        compiler_params=pltpu.CompilerParams(
            dimension_semantics=("parallel", "parallel", "arbitrary"),
            vmem_limit_bytes=vmem_limit),
    )(qh, kh, vh, wo_heads, bo)
    return out, attn


def _reference(x, params, num_heads):
    """Pure-JAX reference mirroring the PyTorch forward."""
    B, S, H = x.shape
    hd = H // num_heads

    def lin(t, w, b):
        return t @ w.T + b

    Q = lin(x, params["wq"], params["bq"]).reshape(B, S, num_heads, hd).transpose(0, 2, 1, 3)
    K = lin(x, params["wk"], params["bk"]).reshape(B, S, num_heads, hd).transpose(0, 2, 1, 3)
    V = lin(x, params["wv"], params["bv"]).reshape(B, S, num_heads, hd).transpose(0, 2, 1, 3)
    scores = jnp.einsum("bhqd,bhkd->bhqk", Q, K) / jnp.sqrt(jnp.float32(hd))
    w = jax.nn.softmax(scores, axis=-1)
    ao = jnp.einsum("bhqk,bhkd->bhqd", w, V).transpose(0, 2, 1, 3).reshape(B, S, H)
    out = lin(ao, params["wo"], params["bo"])
    return out, w


if __name__ == "__main__":
    B, S, H, NUM_HEADS = 2, 8, 32, 4

    key = jax.random.PRNGKey(0)
    keys = jax.random.split(key, 9)
    bound = 1.0 / jnp.sqrt(jnp.float32(H))
    params = {
        "wq": jax.random.uniform(keys[0], (H, H), jnp.float32, -bound, bound),
        "bq": jax.random.uniform(keys[1], (H,), jnp.float32, -bound, bound),
        "wk": jax.random.uniform(keys[2], (H, H), jnp.float32, -bound, bound),
        "bk": jax.random.uniform(keys[3], (H,), jnp.float32, -bound, bound),
        "wv": jax.random.uniform(keys[4], (H, H), jnp.float32, -bound, bound),
        "bv": jax.random.uniform(keys[5], (H,), jnp.float32, -bound, bound),
        "wo": jax.random.uniform(keys[6], (H, H), jnp.float32, -bound, bound),
        "bo": jax.random.uniform(keys[7], (H,), jnp.float32, -bound, bound),
    }
    x = jax.random.normal(keys[8], (B, S, H), jnp.float32)

    ref_out, ref_attn = _reference(x, params, NUM_HEADS)

    # Default (bf16-fed MXU, f32 accumulation) path.
    out, attn = multi_head_self_attention(x, params, NUM_HEADS)
    out = jax.block_until_ready(out)
    attn = jax.block_until_ready(attn)
    assert out.shape == (B, S, H)
    assert attn.shape == (B, NUM_HEADS, S, S)
    assert jnp.allclose(out, ref_out, atol=5e-2, rtol=5e-2), \
        float(jnp.max(jnp.abs(out - ref_out)))
    assert jnp.allclose(attn, ref_attn, atol=5e-2, rtol=5e-2), \
        float(jnp.max(jnp.abs(attn - ref_attn)))

    # Full-f32 path for tight numerical verification (only approximation is the
    # Newton-refined EUP reciprocal in the softmax normalisation).
    out32, attn32 = multi_head_self_attention(x, params, NUM_HEADS,
                                              mxu_dtype=jnp.float32)
    out32 = jax.block_until_ready(out32)
    attn32 = jax.block_until_ready(attn32)
    assert jnp.allclose(out32, ref_out, atol=1e-4, rtol=1e-4), \
        float(jnp.max(jnp.abs(out32 - ref_out)))
    assert jnp.allclose(attn32, ref_attn, atol=1e-4, rtol=1e-4), \
        float(jnp.max(jnp.abs(attn32 - ref_attn)))

    print("KERNEL_OK")
</pallas_src>

<mosaic_0001>
module attributes {stable_mosaic.version = 11 : i64} {
  func.func @_mhsa_kernel(%arg0: i32, %arg1: i32, %arg2: i32, %arg3: memref<1x4x8x8xbf16, #tpu.memory_space<vmem>>, %arg4: memref<1x4x8x8xbf16, #tpu.memory_space<vmem>>, %arg5: memref<1x4x8x8xbf16, #tpu.memory_space<vmem>>, %arg6: memref<4x8x32xbf16, #tpu.memory_space<vmem>>, %arg7: memref<1x32xf32, #tpu.memory_space<vmem>>, %arg8: memref<1x8x32xf32, #tpu.memory_space<vmem>>, %arg9: memref<1x4x8x8xf32, #tpu.memory_space<vmem>>, %arg10: memref<8x32xf32, #tpu.memory_space<vmem>>) attributes {dimension_semantics = [#tpu.dimension_semantics<parallel>, #tpu.dimension_semantics<parallel>, #tpu.dimension_semantics<arbitrary>], iteration_bounds = array<i64: 2, 1, 1>, scalar_prefetch = 0 : i64, scratch_operands = 1 : i64, tpu.core_type = #tpu.core_type<tc>, window_params = [{transform_indices = @transform_0, window_bounds = array<i64: 1, 4, 8, 8>}, {transform_indices = @transform_1, window_bounds = array<i64: 1, 4, 8, 8>}, {transform_indices = @transform_2, window_bounds = array<i64: 1, 4, 8, 8>}, {pipeline_mode = #tpu.pipeline_mode<synchronous>, transform_indices = @transform_3, window_bounds = array<i64: 4, 8, 32>}, {pipeline_mode = #tpu.pipeline_mode<synchronous>, transform_indices = @transform_4, window_bounds = array<i64: 1, 32>}, {transform_indices = @transform_5, window_bounds = array<i64: 1, 8, 32>}, {transform_indices = @transform_6, window_bounds = array<i64: 1, 4, 8, 8>}]} {
    %c0 = arith.constant 0 : index
    %c0_0 = arith.constant 0 : index
    %c0_1 = arith.constant 0 : index
    %c0_2 = arith.constant 0 : index
    %0 = vector.load %arg3[%c0, %c0_0, %c0_1, %c0_2] : memref<1x4x8x8xbf16, #tpu.memory_space<vmem>>, vector<1x4x8x8xbf16>
    %1 = vector.shape_cast %0 : vector<1x4x8x8xbf16> to vector<4x8x8xbf16>
    %c0_3 = arith.constant 0 : index
    %c0_4 = arith.constant 0 : index
    %c0_5 = arith.constant 0 : index
    %c0_6 = arith.constant 0 : index
    %2 = vector.load %arg4[%c0_3, %c0_4, %c0_5, %c0_6] : memref<1x4x8x8xbf16, #tpu.memory_space<vmem>>, vector<1x4x8x8xbf16>
    %3 = vector.shape_cast %2 : vector<1x4x8x8xbf16> to vector<4x8x8xbf16>
    %c0_7 = arith.constant 0 : index
    %c0_8 = arith.constant 0 : index
    %c0_9 = arith.constant 0 : index
    %c0_10 = arith.constant 0 : index
    %4 = vector.load %arg5[%c0_7, %c0_8, %c0_9, %c0_10] : memref<1x4x8x8xbf16, #tpu.memory_space<vmem>>, vector<1x4x8x8xbf16>
    %5 = vector.shape_cast %4 : vector<1x4x8x8xbf16> to vector<4x8x8xbf16>
    %cst = arith.constant dense<0.000000e+00> : vector<4x8x8xf32>
    %6 = tpu.matmul %1, %3, %cst {dimension_numbers = #tpu.dot_dimension_numbers<[2], [2], [1], [1], [0, 0, 0, 1, 1, 1], [0], [0]>} : vector<4x8x8xbf16>, vector<4x8x8xbf16>, vector<4x8x8xf32> -> vector<4x8x8xf32>
    %cst_11 = arith.constant dense<0xFF800000> : vector<4x8xf32>
    %7 = vector.multi_reduction <maximumf>, %6, %cst_11 [2] : vector<4x8x8xf32> to vector<4x8xf32>
    %8 = vector.shape_cast %7 : vector<4x8xf32> to vector<4x8x1xf32>
    %9 = vector.broadcast %8 : vector<4x8x1xf32> to vector<4x8x8xf32>
    %10 = arith.subf %6, %9 : vector<4x8x8xf32>
    %11 = math.exp %10 : vector<4x8x8xf32>
    %cst_12 = arith.constant dense<0.000000e+00> : vector<4x8xf32>
    %12 = vector.multi_reduction <add>, %11, %cst_12 [2] : vector<4x8x8xf32> to vector<4x8xf32>
    %13 = vector.shape_cast %12 : vector<4x8xf32> to vector<4x8x1xf32>
    %14 = tpu.reciprocal %13 {approx = true} : vector<4x8x1xf32> -> vector<4x8x1xf32>
    %15 = arith.mulf %13, %14 : vector<4x8x1xf32>
    %cst_13 = arith.constant 2.000000e+00 : f32
    %16 = vector.broadcast %cst_13 : f32 to vector<4x8x1xf32>
    %17 = arith.subf %16, %15 : vector<4x8x1xf32>
    %18 = arith.mulf %14, %17 : vector<4x8x1xf32>
    %19 = vector.broadcast %18 : vector<4x8x1xf32> to vector<4x8x8xf32>
    %20 = arith.mulf %11, %19 : vector<4x8x8xf32>
    %c0_14 = arith.constant 0 : index
    %c0_15 = arith.constant 0 : index
    %c0_16 = arith.constant 0 : index
    %c0_17 = arith.constant 0 : index
    %21 = vector.load %arg9[%c0_14, %c0_15, %c0_16, %c0_17] : memref<1x4x8x8xf32, #tpu.memory_space<vmem>>, vector<1x4x8x8xf32>
    %22 = vector.shape_cast %21 : vector<1x4x8x8xf32> to vector<4x8x8xf32>
    %23 = vector.shape_cast %20 : vector<4x8x8xf32> to vector<1x4x8x8xf32>
    tpu.vector_store %arg9[%c0_14, %c0_15, %c0_16, %c0_17], %23 {strides = array<i32>} : memref<1x4x8x8xf32, #tpu.memory_space<vmem>>, vector<1x4x8x8xf32>,
    %24 = arith.truncf %20 : vector<4x8x8xf32> to vector<4x8x8xbf16>
    %cst_18 = arith.constant dense<0.000000e+00> : vector<4x8x8xf32>
    %25 = tpu.matmul %24, %5, %cst_18 {dimension_numbers = #tpu.dot_dimension_numbers<[2], [1], [1], [2], [0, 0, 0, 1, 1, 2], [0], [0]>} : vector<4x8x8xbf16>, vector<4x8x8xbf16>, vector<4x8x8xf32> -> vector<4x8x8xf32>
    %c4_i32 = arith.constant 4 : i32
    %26 = arith.muli %arg2, %c4_i32 : i32
    %27 = tpu.assume_multiple %26, 4 : i32
    %28 = arith.index_cast %27 : i32 to index
    %c0_19 = arith.constant 0 : index
    %c0_20 = arith.constant 0 : index
    %29 = vector.load %arg6[%28, %c0_19, %c0_20] : memref<4x8x32xbf16, #tpu.memory_space<vmem>>, vector<4x8x32xbf16>
    %30 = arith.truncf %25 : vector<4x8x8xf32> to vector<4x8x8xbf16>
    %cst_21 = arith.constant dense<0.000000e+00> : vector<4x8x32xf32>
    %31 = tpu.matmul %30, %29, %cst_21 {dimension_numbers = #tpu.dot_dimension_numbers<[2], [1], [1], [2], [0, 0, 0, 1, 1, 2], [0], [0]>} : vector<4x8x8xbf16>, vector<4x8x32xbf16>, vector<4x8x32xf32> -> vector<4x8x32xf32>
    %cst_22 = arith.constant dense<0.000000e+00> : vector<8x32xf32>
    %32 = vector.multi_reduction <add>, %31, %cst_22 [0] : vector<4x8x32xf32> to vector<8x32xf32>
    %c0_i32 = arith.constant 0 : i32
    %33 = arith.cmpi eq, %arg2, %c0_i32 : i32
    %34 = arith.extui %33 : i1 to i32
    %c0_i32_23 = arith.constant 0 : i32
    %35 = arith.cmpi ne, %34, %c0_i32_23 : i32
    scf.if %35 {
      %c0_30 = arith.constant 0 : index
      %c0_31 = arith.constant 0 : index
      %42 = vector.load %arg7[%c0_30, %c0_31] : memref<1x32xf32, #tpu.memory_space<vmem>>, vector<1x32xf32>
      %43 = vector.shape_cast %42 : vector<1x32xf32> to vector<1x32xf32>
      %44 = vector.broadcast %43 : vector<1x32xf32> to vector<8x32xf32>
      %c0_32 = arith.constant 0 : index
      %c0_33 = arith.constant 0 : index
      %45 = vector.load %arg10[%c0_32, %c0_33] : memref<8x32xf32, #tpu.memory_space<vmem>>, vector<8x32xf32>
      tpu.vector_store %arg10[%c0_32, %c0_33], %44 {strides = array<i32>} : memref<8x32xf32, #tpu.memory_space<vmem>>, vector<8x32xf32>,
    } else {
    }
    %c0_24 = arith.constant 0 : index
    %c0_25 = arith.constant 0 : index
    %36 = vector.load %arg10[%c0_24, %c0_25] : memref<8x32xf32, #tpu.memory_space<vmem>>, vector<8x32xf32>
    %37 = arith.addf %36, %32 : vector<8x32xf32>
    %c0_26 = arith.constant 0 : index
    %c0_27 = arith.constant 0 : index
    %38 = vector.load %arg10[%c0_26, %c0_27] : memref<8x32xf32, #tpu.memory_space<vmem>>, vector<8x32xf32>
    tpu.vector_store %arg10[%c0_26, %c0_27], %37 {strides = array<i32>} : memref<8x32xf32, #tpu.memory_space<vmem>>, vector<8x32xf32>,
    %c0_i32_28 = arith.constant 0 : i32
    %39 = arith.cmpi eq, %arg2, %c0_i32_28 : i32
    %40 = arith.extui %39 : i1 to i32
    %c0_i32_29 = arith.constant 0 : i32
    %41 = arith.cmpi ne, %40, %c0_i32_29 : i32
    scf.if %41 {
      %c0_30 = arith.constant 0 : index
      %c0_31 = arith.constant 0 : index
      %42 = vector.load %arg10[%c0_30, %c0_31] : memref<8x32xf32, #tpu.memory_space<vmem>>, vector<8x32xf32>
      %c0_32 = arith.constant 0 : index
      %c0_33 = arith.constant 0 : index
      %c0_34 = arith.constant 0 : index
      %43 = vector.load %arg8[%c0_32, %c0_33, %c0_34] : memref<1x8x32xf32, #tpu.memory_space<vmem>>, vector<1x8x32xf32>
      %44 = vector.shape_cast %43 : vector<1x8x32xf32> to vector<8x32xf32>
      %45 = vector.shape_cast %42 : vector<8x32xf32> to vector<1x8x32xf32>
      tpu.vector_store %arg8[%c0_32, %c0_33, %c0_34], %45 {strides = array<i32>} : memref<1x8x32xf32, #tpu.memory_space<vmem>>, vector<1x8x32xf32>,
    } else {
    }
    return
  }
  func.func @transform_0(%arg0: i32, %arg1: i32, %arg2: i32) -> (i32, i32, i32, i32) {
    %c0_i32 = arith.constant 0 : i32
    %c0_i32_0 = arith.constant 0 : i32
    return %arg0, %arg2, %arg1, %c0_i32 : i32, i32, i32, i32
  }
  func.func @transform_1(%arg0: i32, %arg1: i32, %arg2: i32) -> (i32, i32, i32, i32) {
    %c0_i32 = arith.constant 0 : i32
    %c0_i32_0 = arith.constant 0 : i32
    %c0_i32_1 = arith.constant 0 : i32
    return %arg0, %arg2, %c0_i32, %c0_i32_0 : i32, i32, i32, i32
  }
  func.func @transform_2(%arg0: i32, %arg1: i32, %arg2: i32) -> (i32, i32, i32, i32) {
    %c0_i32 = arith.constant 0 : i32
    %c0_i32_0 = arith.constant 0 : i32
    %c0_i32_1 = arith.constant 0 : i32
    return %arg0, %arg2, %c0_i32, %c0_i32_0 : i32, i32, i32, i32
  }
  func.func @transform_3(%arg0: i32, %arg1: i32, %arg2: i32) -> (i32, i32, i32) {
    %c0_i32 = arith.constant 0 : i32
    %c0_i32_0 = arith.constant 0 : i32
    %c0_i32_1 = arith.constant 0 : i32
    %c0_i32_2 = arith.constant 0 : i32
    return %c0_i32, %c0_i32_0, %c0_i32_1 : i32, i32, i32
  }
  func.func @transform_4(%arg0: i32, %arg1: i32, %arg2: i32) -> (i32, i32) {
    %c0_i32 = arith.constant 0 : i32
    %c0_i32_0 = arith.constant 0 : i32
    %c0_i32_1 = arith.constant 0 : i32
    return %c0_i32, %c0_i32_0 : i32, i32
  }
  func.func @transform_5(%arg0: i32, %arg1: i32, %arg2: i32) -> (i32, i32, i32) {
    %c0_i32 = arith.constant 0 : i32
    %c0_i32_0 = arith.constant 0 : i32
    return %arg0, %arg1, %c0_i32 : i32, i32, i32
  }
  func.func @transform_6(%arg0: i32, %arg1: i32, %arg2: i32) -> (i32, i32, i32, i32) {
    %c0_i32 = arith.constant 0 : i32
    %c0_i32_0 = arith.constant 0 : i32
    return %arg0, %arg2, %arg1, %c0_i32 : i32, i32, i32, i32
  }
}

</mosaic_0001>

<llo_original>
// kernel: tpu_custom_call.1
$region0: #{tpu_custom_call.1}
  #allocation0 [shape = 'u32[]', space=smem, size = 0x4, offset = 0x4, fixed_abs, tag = 'smem constant byte address 0x4 - core index']
  #allocation1 [shape = 'u32[144,128]{1,0:T(1,128)}', space=vmem, size = 0x12000, scoped, tag = 'internal scratch']
  #allocation2 [shape = 'f32[8,32]{1,0:T(8,128)}', space=vmem, size = 0x1000, scoped, tag = 'scratch operand']
  %s0 = inlined_call_operand.hbm [shape: bf16[2,4,8,8], index: 0, kind: input, shape index: {}]
  %s1 = inlined_call_operand.hbm [shape: bf16[2,4,8,8], index: 1, kind: input, shape index: {}]
  %s2 = inlined_call_operand.hbm [shape: bf16[2,4,8,8], index: 2, kind: input, shape index: {}]
  %s3 = inlined_call_operand.hbm [shape: bf16[4,8,32], index: 3, kind: input, shape index: {}]
  %s4 = inlined_call_operand.vmem [shape: f32[1,32], index: 4, kind: input, shape index: {}]
  %s5 = inlined_call_operand.hbm [shape: f32[2,8,32], index: 5, kind: output, shape index: {0}]
  %s6 = inlined_call_operand.hbm [shape: f32[2,4,8,8], index: 6, kind: output, shape index: {1}]
  %7 = xla_tuple %s5, %s6
  %s8 = sld [smem:[#allocation0]]
  $region85: #{tpu_custom_call.1} parent=0
    _
  %s10 = ssub.s32 1, %s8
  %s11 = scalar_select 0, %s10, %s8
  $region1: #{tpu_custom_call.1} parent=0
    #allocation3 [shape = 'u8[16384]{0}', space=vmem, size = 0x4000, scoped, tag = 'input window, operand 0']
    #allocation4 [shape = 's32[2]{0}', space=sflag, size = 0x8, scoped, tag = 'scoped memory for tpu_custom_call.1']
    #allocation5 [shape = 's32[2]{0}', space=sflag, size = 0x8, scoped, tag = 'scoped memory for tpu_custom_call.1']
    #allocation6 [shape = 'u8[16384]{0}', space=vmem, size = 0x4000, scoped, tag = 'input window, operand 1']
    #allocation7 [shape = 's32[2]{0}', space=sflag, size = 0x8, scoped, tag = 'scoped memory for tpu_custom_call.1']
    #allocation8 [shape = 'u8[16384]{0}', space=vmem, size = 0x4000, scoped, tag = 'input window, operand 2']
    #allocation9 [shape = 'u8[8192]{0}', space=vmem, size = 0x2000, scoped, tag = 'input window, operand 3, single buffered']
    #allocation10 [shape = 's32[1]{0}', space=sflag, size = 0x4, scoped, tag = 'scoped memory for tpu_custom_call.1']
    #allocation11 [shape = 'u8[8192]{0}', space=vmem, size = 0x2000, scoped, tag = 'output window, operand 0']
    #allocation12 [shape = 'u8[32768]{0}', space=vmem, size = 0x8000, scoped, tag = 'output window, operand 1']
    #allocation13 [shape = 's32[2]{0}', space=sflag, size = 0x8, scoped, tag = 'scoped memory for tpu_custom_call.1']
    %12 = vsyncpa [#allocation4], 0
    %s13 = scalar_lea.sflag [#allocation4], 1
    %14 = vsyncpa %s13, 0
    %15 = vsyncpa [#allocation7], 0
    %s16 = scalar_lea.sflag [#allocation7], 1
    %17 = vsyncpa %s16, 0
    %18 = vsyncpa [#allocation10], 0
    %19 = vsyncpa [#allocation5], 0
    %s20 = scalar_lea.sflag [#allocation5], 1
    %21 = vsyncpa %s20, 0
    %22 = vsyncpa [#allocation13], 0
    %s23 = scalar_lea.sflag [#allocation13], 1
    %24 = vsyncpa %s23, 0
    loop: start=0, step=1, limit=4
    $region2: #{tpu_custom_call.1} parent=1 // loop_pre_header
      _
    $region3: #{tpu_custom_call.1} parent=1 // loop_header
      %s26 = sphi 0, %s30
      %p27 = scmp.ge.s32.totalorder %s26, 4
      %s33 = sphi 0, %s52
      %s34 = sphi 0, %s48
      %s35 = sphi 0, %s44
      %s36 = sphi 0, %s33
      %s37 = sphi 0, %s34
      %s38 = sphi 0, %s35
      %s39 = sphi 0, %s36
      %s40 = sphi 0, %s37
      %s41 = sphi 0, %s38
      %s59 = sphi 0, %s61
      %s62 = sphi 0, %s59
      %s63 = sphi 0, %s62
      %s79 = sphi 0, %s63
      %s87 = sphi 0, %s89
      %s90 = sphi 0, %s87
      %s91 = sphi 0, %s90
      %s107 = sphi 0, %s91
      %s115 = sphi 0, %s117
      %s118 = sphi 0, %s115
      %s119 = sphi 0, %s118
      %s135 = sphi 0, %s119
      %s139 = sphi 0, %s139
      %s141 = sphi 0, %s139
      %s142 = sphi 0, %s141
      %s156 = sphi 0, %s142
      %s160 = sphi 0, %s160
      %s162 = sphi 0, %s160
      %s163 = sphi 0, %s162
      %s177 = sphi 0, %s163
      %s185 = sphi 0, %s187
      %s188 = sphi 0, %s185
      %s189 = sphi 0, %s188
      %s205 = sphi 0, %s189
      %s215 = sphi 0, %s217
      %s218 = sphi 0, %s215
      %s219 = sphi 0, %s218
      %s235 = sphi 0, %s219
    $region4: #{tpu_custom_call.1} parent=1 // loop_header_branch
      %29 = sbr.rel (%p27) target = $region8
    $region5: #{tpu_custom_call.1} parent=1 // loop_body
      %s31 = ssub.s32 %s26, 1
      %s32 = ssub.s32 %s26, 2
      %s42 = sadd.s32 1, %s35
      %p43 = scmp.ge.s32.totalorder %s42, 1
      %s44 = scalar_select %p43, 0, %s42
      %s45 = sadd.s32 1, %s34
      %s46 = scalar_select %p43, %s45, %s34
      %p47 = scmp.ge.s32.totalorder %s46, 1
      %s48 = scalar_select %p47, 0, %s46
      %s49 = sadd.s32 1, %s33
      %s50 = scalar_select %p47, %s49, %s33
      %p51 = scmp.ge.s32.totalorder %s50, 2
      %s52 = scalar_select %p51, 0, %s50
      %s53 = ssub.s32 %s33, %s52
      %s54 = ssub.s32 %s35, %s44
      %s55 = sor.u32 %s53, %s54
      %s56 = ssub.s32 %s34, %s48
      %s57 = sor.u32 %s55, %s56
      %p58 = scmp.eq.s32.totalorder %s57, 0
      %s60 = sadd.s32 %s59, 1
      %s61 = scalar_select %p58, %s59, %s60
      %p64 = pneg %p58
      %p65 = scmp.eq.s32.totalorder %s26, 1
      %p66 = por %p64, %p65
      %p67 = scmp.ne.s32.totalorder %s59, %s62
      %p68 = scmp.eq.s32.totalorder %s26, 0
      %p69 = por %p67, %p68
      %p70 = scmp.ne.s32.totalorder %s59, %s62
      %p71 = scmp.eq.s32.totalorder %s31, 1
      %p72 = por %p70, %p71
      %p73 = scmp.ne.s32.totalorder %s62, %s63
      %p74 = scmp.eq.s32.totalorder %s31, 0
      %p75 = por %p73, %p74
      %p76 = scmp.ne.s32.totalorder %s62, %s63
      %p77 = scmp.eq.s32.totalorder %s32, 1
      %p78 = por %p76, %p77
      %p80 = scmp.ne.s32.totalorder %s63, %s79
      %p81 = scmp.eq.s32.totalorder %s32, 0
      %p82 = por %p80, %p81
      %s83 = ssub.s32 %s33, %s52
      %s84 = ssub.s32 %s35, %s44
      %s85 = sor.u32 %s83, %s84
      %p86 = scmp.eq.s32.totalorder %s85, 0
      %s88 = sadd.s32 %s87, 1
      %s89 = scalar_select %p86, %s87, %s88
      %p92 = pneg %p86
      %p93 = scmp.eq.s32.totalorder %s26, 1
      %p94 = por %p92, %p93
      %p95 = scmp.ne.s32.totalorder %s87, %s90
      %p96 = scmp.eq.s32.totalorder %s26, 0
      %p97 = por %p95, %p96
      %p98 = scmp.ne.s32.totalorder %s87, %s90
      %p99 = scmp.eq.s32.totalorder %s31, 1
      %p100 = por %p98, %p99
      %p101 = scmp.ne.s32.totalorder %s90, %s91
      %p102 = scmp.eq.s32.totalorder %s31, 0
      %p103 = por %p101, %p102
      %p104 = scmp.ne.s32.totalorder %s90, %s91
      %p105 = scmp.eq.s32.totalorder %s32, 1
      %p106 = por %p104, %p105
      %p108 = scmp.ne.s32.totalorder %s91, %s107
      %p109 = scmp.eq.s32.totalorder %s32, 0
      %p110 = por %p108, %p109
      %s111 = ssub.s32 %s33, %s52
      %s112 = ssub.s32 %s35, %s44
      %s113 = sor.u32 %s111, %s112
      %p114 = scmp.eq.s32.totalorder %s113, 0
      %s116 = sadd.s32 %s115, 1
      %s117 = scalar_select %p114, %s115, %s116
      %p120 = pneg %p114
      %p121 = scmp.eq.s32.totalorder %s26, 1
      %p122 = por %p120, %p121
      %p123 = scmp.ne.s32.totalorder %s115, %s118
      %p124 = scmp.eq.s32.totalorder %s26, 0
      %p125 = por %p123, %p124
      %p126 = scmp.ne.s32.totalorder %s115, %s118
      %p127 = scmp.eq.s32.totalorder %s31, 1
      %p128 = por %p126, %p127
      %p129 = scmp.ne.s32.totalorder %s118, %s119
      %p130 = scmp.eq.s32.totalorder %s31, 0
      %p131 = por %p129, %p130
      %p132 = scmp.ne.s32.totalorder %s118, %s119
      %p133 = scmp.eq.s32.totalorder %s32, 1
      %p134 = por %p132, %p133
      %p136 = scmp.ne.s32.totalorder %s119, %s135
      %p137 = scmp.eq.s32.totalorder %s32, 0
      %p138 = por %p136, %p137
      %s140 = sadd.s32 %s139, 1
      %p143 = scmp.eq.s32.totalorder %s26, 1
      %p144 = scmp.ne.s32.totalorder %s139, %s141
      %p145 = scmp.eq.s32.totalorder %s26, 0
      %p146 = por %p144, %p145
      %p147 = scmp.ne.s32.totalorder %s139, %s141
      %p148 = scmp.eq.s32.totalorder %s31, 1
      %p149 = por %p147, %p148
      %p150 = scmp.ne.s32.totalorder %s141, %s142
      %p151 = scmp.eq.s32.totalorder %s31, 0
      %p152 = por %p150, %p151
      %p153 = scmp.ne.s32.totalorder %s141, %s142
      %p154 = scmp.eq.s32.totalorder %s32, 1
      %p155 = por %p153, %p154
      %p157 = scmp.ne.s32.totalorder %s142, %s156
      %p158 = scmp.eq.s32.totalorder %s32, 0
      %p159 = por %p157, %p158
      %s161 = sadd.s32 %s160, 1
      %p164 = scmp.eq.s32.totalorder %s26, 1
      %p165 = scmp.ne.s32.totalorder %s160, %s162
      %p166 = scmp.eq.s32.totalorder %s26, 0
      %p167 = por %p165, %p166
      %p168 = scmp.ne.s32.totalorder %s160, %s162
      %p169 = scmp.eq.s32.totalorder %s31, 1
      %p170 = por %p168, %p169
      %p171 = scmp.ne.s32.totalorder %s162, %s163
      %p172 = scmp.eq.s32.totalorder %s31, 0
      %p173 = por %p171, %p172
      %p174 = scmp.ne.s32.totalorder %s162, %s163
      %p175 = scmp.eq.s32.totalorder %s32, 1
      %p176 = por %p174, %p175
      %p178 = scmp.ne.s32.totalorder %s163, %s177
      %p179 = scmp.eq.s32.totalorder %s32, 0
      %p180 = por %p178, %p179
      %s181 = ssub.s32 %s33, %s52
      %s182 = ssub.s32 %s34, %s48
      %s183 = sor.u32 %s181, %s182
      %p184 = scmp.eq.s32.totalorder %s183, 0
      %s186 = sadd.s32 %s185, 1
      %s187 = scalar_select %p184, %s185, %s186
      %p190 = pneg %p184
      %p191 = scmp.eq.s32.totalorder %s26, 1
      %p192 = por %p190, %p191
      %p193 = scmp.ne.s32.totalorder %s185, %s188
      %p194 = scmp.eq.s32.totalorder %s26, 0
      %p195 = por %p193, %p194
      %p196 = scmp.ne.s32.totalorder %s185, %s188
      %p197 = scmp.eq.s32.totalorder %s31, 1
      %p198 = por %p196, %p197
      %p199 = scmp.ne.s32.totalorder %s188, %s189
      %p200 = scmp.eq.s32.totalorder %s31, 0
      %p201 = por %p199, %p200
      %p202 = scmp.ne.s32.totalorder %s188, %s189
      %p203 = scmp.eq.s32.totalorder %s32, 1
      %p204 = por %p202, %p203
      %p206 = scmp.ne.s32.totalorder %s189, %s205
      %p207 = scmp.eq.s32.totalorder %s32, 0
      %p208 = por %p206, %p207
      %s209 = ssub.s32 %s33, %s52
      %s210 = ssub.s32 %s35, %s44
      %s211 = sor.u32 %s209, %s210
      %s212 = ssub.s32 %s34, %s48
      %s213 = sor.u32 %s211, %s212
      %p214 = scmp.eq.s32.totalorder %s213, 0
      %s216 = sadd.s32 %s215, 1
      %s217 = scalar_select %p214, %s215, %s216
      %p220 = pneg %p214
      %p221 = scmp.eq.s32.totalorder %s26, 1
      %p222 = por %p220, %p221
      %p223 = scmp.ne.s32.totalorder %s215, %s218
      %p224 = scmp.eq.s32.totalorder %s26, 0
      %p225 = por %p223, %p224
      %p226 = scmp.ne.s32.totalorder %s215, %s218
      %p227 = scmp.eq.s32.totalorder %s31, 1
      %p228 = por %p226, %p227
      %p229 = scmp.ne.s32.totalorder %s218, %s219
      %p230 = scmp.eq.s32.totalorder %s31, 0
      %p231 = por %p229, %p230
      %p232 = scmp.ne.s32.totalorder %s218, %s219
      %p233 = scmp.eq.s32.totalorder %s32, 1
      %p234 = por %p232, %p233
      %p236 = scmp.ne.s32.totalorder %s219, %s235
      %p237 = scmp.eq.s32.totalorder %s32, 0
      %p238 = por %p236, %p237
      %p239 = scmp.le.s32.totalorder 1, %s26
      %p240 = scmp.lt.s32.totalorder %s26, 3
      %p241 = pnand %p239, %p240
      %p242 = pneg %p241
      // Predicated region
      $region9: #{tpu_custom_call.1} parent=5 // pred_check
        _
      $region10: #{tpu_custom_call.1} parent=5 // pred_check_branch
        %244 = sbr.rel (%p241) target = $region12
      $region11: #{tpu_custom_call.1} parent=5 // pred_region
        %s245 = ssub.s32 %s26, 1
        // Predicated region
        $region13: #{tpu_custom_call.1} parent=11 // pred_check
          %p246 = pneg %p152
        $region14: #{tpu_custom_call.1} parent=11 // pred_check_branch
          %248 = sbr.rel (%p246) target = $region16
        $region15: #{tpu_custom_call.1} parent=11 // pred_region
          %s250 = ssub.s32 256, 256
          %251 = vsyncadd [#allocation10], %s250
          %s252 = sshll.u32 [#allocation9], 4
          %s253 = int_to_ptr.vmem [resolvable:$true] %s252
          %258 = dma.hbm_to_vmem [thread:$0]  %s3, 256, %s253, [#allocation10], 64, 64, 4
        $region16: #{tpu_custom_call.1} parent=11 // pred_fallthru
          _
        // Predicated region
        $region17: #{tpu_custom_call.1} parent=11 // pred_check
          %p259 = pneg %p173
        $region18: #{tpu_custom_call.1} parent=11 // pred_check_branch
          %261 = sbr.rel (%p259) target = $region20
        $region19: #{tpu_custom_call.1} parent=11 // pred_region
          _
        $region20: #{tpu_custom_call.1} parent=11 // pred_fallthru
          _
      $region12: #{tpu_custom_call.1} parent=5 // pred_fallthru
        _
      %p262 = scmp.lt.s32.totalorder %s26, 2
      // Predicated region
      $region21: #{tpu_custom_call.1} parent=5 // pred_check
        %p263 = pneg %p262
      $region22: #{tpu_custom_call.1} parent=5 // pred_check_branch
        %265 = sbr.rel (%p263) target = $region24
      $region23: #{tpu_custom_call.1} parent=5 // pred_region
        // Predicated region
        $region25: #{tpu_custom_call.1} parent=23 // pred_check
          %p266 = pneg %p69
        $region26: #{tpu_custom_call.1} parent=23 // pred_check_branch
          %268 = sbr.rel (%p266) target = $region28
        $region27: #{tpu_custom_call.1} parent=23 // pred_region
          %s269 = sand.u32 %s59, 1
          %s270 = scalar_lea.sflag [#allocation4], %s269
          %s271 = sand.u32 %s59, 1
          %s272 = smul.addr %s271, 16
          %s273 = scalar_lea.vmem [#allocation3], %s272
          %s274 = smul.u32 4, %s35
          %s276 = ssub.s32 256, 256
          %277 = vsyncadd %s270, %s276
          %s278 = sadd.s32 %s34, %s274
          %s279 = smul.addr %s33, 4
          %s280 = sadd.s32 %s278, %s279
          %s281 = smul.addr %s280, 64
          %s282 = scalar_lea.hbm %s0, %s281
          %s283 = sshll.u32 %s273, 4
          %s284 = int_to_ptr.vmem [resolvable:$true] %s283
          %289 = dma.hbm_to_vmem [thread:$0]  %s282, 256, %s284, %s270, 64, 64, 4
        $region28: #{tpu_custom_call.1} parent=23 // pred_fallthru
          _
        // Predicated region
        $region29: #{tpu_custom_call.1} parent=23 // pred_check
          %p290 = pneg %p97
        $region30: #{tpu_custom_call.1} parent=23 // pred_check_branch
          %292 = sbr.rel (%p290) target = $region32
        $region31: #{tpu_custom_call.1} parent=23 // pred_region
          %s293 = sand.u32 %s26, 1
          %s294 = scalar_lea.sflag [#allocation7], %s293
          %s295 = sand.u32 %s87, 1
          %s296 = smul.addr %s295, 16
          %s297 = scalar_lea.vmem [#allocation6], %s296
          %s298 = smul.u32 4, %s35
          %s300 = ssub.s32 256, 256
          %301 = vsyncadd %s294, %s300
          %s302 = smul.addr %s33, 4
          %s303 = sadd.s32 %s298, %s302
          %s304 = smul.addr %s303, 64
          %s305 = scalar_lea.hbm %s1, %s304
          %s306 = sshll.u32 %s297, 4
          %s307 = int_to_ptr.vmem [resolvable:$true] %s306
          %312 = dma.hbm_to_vmem [thread:$0]  %s305, 256, %s307, %s294, 64, 64, 4
        $region32: #{tpu_custom_call.1} parent=23 // pred_fallthru
          _
        // Predicated region
        $region33: #{tpu_custom_call.1} parent=23 // pred_check
          %p313 = pneg %p125
        $region34: #{tpu_custom_call.1} parent=23 // pred_check_branch
          %315 = sbr.rel (%p313) target = $region36
        $region35: #{tpu_custom_call.1} parent=23 // pred_region
          %s316 = sand.u32 %s26, 1
          %s317 = scalar_lea.sflag [#allocation7], %s316
          %s318 = sand.u32 %s115, 1
          %s319 = smul.addr %s318, 16
          %s320 = scalar_lea.vmem [#allocation8], %s319
          %s321 = smul.u32 4, %s35
          %s323 = ssub.s32 256, 256
          %324 = vsyncadd %s317, %s323
          %s325 = smul.addr %s33, 4
          %s326 = sadd.s32 %s321, %s325
          %s327 = smul.addr %s326, 64
          %s328 = scalar_lea.hbm %s2, %s327
          %s329 = sshll.u32 %s320, 4
          %s330 = int_to_ptr.vmem [resolvable:$true] %s329
          %335 = dma.hbm_to_vmem [thread:$0]  %s328, 256, %s330, %s317, 64, 64, 4
        $region36: #{tpu_custom_call.1} parent=23 // pred_fallthru
          _
      $region24: #{tpu_custom_call.1} parent=5 // pred_fallthru
        _
      %p336 = scmp.le.s32.totalorder 1, %s26
      %p337 = scmp.lt.s32.totalorder %s26, 3
      %p338 = pnand %p336, %p337
      %p339 = pneg %p338
      // Predicated region
      $region37: #{tpu_custom_call.1} parent=5 // pred_check
        _
      $region38: #{tpu_custom_call.1} parent=5 // pred_check_branch
        %341 = sbr.rel (%p338) target = $region40
      $region39: #{tpu_custom_call.1} parent=5 // pred_region
        %s342 = ssub.s32 %s26, 1
        %s343 = sand.u32 %s62, 1
        %s344 = scalar_lea.sflag [#allocation4], %s343
        %s345 = sand.u32 %s62, 1
        %s346 = smul.addr %s345, 16
        %s347 = scalar_lea.vmem [#allocation3], %s346
        // Predicated region
        $region41: #{tpu_custom_call.1} parent=39 // pred_check
          %p348 = pneg %p75
        $region42: #{tpu_custom_call.1} parent=39 // pred_check_branch
          %350 = sbr.rel (%p348) target = $region44
        $region43: #{tpu_custom_call.1} parent=39 // pred_region
          %351 = dma.done %s344, 256
        $region44: #{tpu_custom_call.1} parent=39 // pred_fallthru
          _
        %s352 = sand.u32 %s31, 1
        %s353 = scalar_lea.sflag [#allocation7], %s352
        %s354 = sand.u32 %s90, 1
        %s355 = smul.addr %s354, 16
        %s356 = scalar_lea.vmem [#allocation6], %s355
        // Predicated region
        $region45: #{tpu_custom_call.1} parent=39 // pred_check
          %p357 = pneg %p103
        $region46: #{tpu_custom_call.1} parent=39 // pred_check_branch
          %359 = sbr.rel (%p357) target = $region48
        $region47: #{tpu_custom_call.1} parent=39 // pred_region
          %360 = dma.done %s353, 256
        $region48: #{tpu_custom_call.1} parent=39 // pred_fallthru
          _
        %s361 = sand.u32 %s31, 1
        %s362 = scalar_lea.sflag [#allocation7], %s361
        %s363 = sand.u32 %s118, 1
        %s364 = smul.addr %s363, 16
        %s365 = scalar_lea.vmem [#allocation8], %s364
        // Predicated region
        $region49: #{tpu_custom_call.1} parent=39 // pred_check
          %p366 = pneg %p131
        $region50: #{tpu_custom_call.1} parent=39 // pred_check_branch
          %368 = sbr.rel (%p366) target = $region52
        $region51: #{tpu_custom_call.1} parent=39 // pred_region
          %369 = dma.done %s362, 256
        $region52: #{tpu_custom_call.1} parent=39 // pred_fallthru
          _
        // Predicated region
        $region53: #{tpu_custom_call.1} parent=39 // pred_check
          %p370 = pneg %p152
        $region54: #{tpu_custom_call.1} parent=39 // pred_check_branch
          %372 = sbr.rel (%p370) target = $region56
        $region55: #{tpu_custom_call.1} parent=39 // pred_region
          %373 = dma.done [#allocation10], 256
        $region56: #{tpu_custom_call.1} parent=39 // pred_fallthru
          _
        %s374 = sand.u32 %s62, 1
        %s375 = scalar_lea.sflag [#allocation4], %s374
        %s376 = sand.u32 %s62, 1
        %s377 = smul.addr %s376, 16
        %s378 = scalar_lea.vmem [#allocation3], %s377
        %p379 = pneg %p75
        %p380 = pneg %p72
        %s381 = sand.u32 %s31, 1
        %s382 = scalar_lea.sflag [#allocation7], %s381
        %s383 = sand.u32 %s90, 1
        %s384 = smul.addr %s383, 16
        %s385 = scalar_lea.vmem [#allocation6], %s384
        %p386 = pneg %p103
        %p387 = pneg %p100
        %s388 = sand.u32 %s31, 1
        %s389 = scalar_lea.sflag [#allocation7], %s388
        %s390 = sand.u32 %s118, 1
        %s391 = smul.addr %s390, 16
        %s392 = scalar_lea.vmem [#allocation8], %s391
        %p393 = pneg %p131
        %p394 = pneg %p128
        %p395 = pneg %p152
        %p396 = pneg %p149
        %p397 = pneg %p173
        %p398 = pneg %p170
        %p399 = pneg %p201
        %p400 = pneg %p198
        %s401 = sand.u32 %s188, 1
        %s402 = scalar_lea.sflag [#allocation5], %s401
        %s403 = sand.u32 %s188, 1
        %s404 = smul.addr %s403, 8
        %s405 = scalar_lea.vmem [#allocation11], %s404
        %p406 = pneg %p231
        %p407 = pneg %p228
        %s408 = sand.u32 %s218, 1
        %s409 = scalar_lea.sflag [#allocation13], %s408
        %s410 = sand.u32 %s218, 1
        %s411 = smul.addr %s410, 32
        %s412 = scalar_lea.vmem [#allocation12], %s411
        %s413 = smul.u32 4, %s38
        %s414 = smul.u32 4, %s38
        %s415 = smul.u32 4, %s38
        %s416 = smul.u32 4, %s38
        %v418 = vld [vmem:[%s347] sm:$0xf]
        %v419 = vld [vmem:[%s347 + $0x4] sm:$0xf]
        %v420 = vld [vmem:[%s347 + $0x8] sm:$0xf]
        %v421 = vld [vmem:[%s347 + $0xc] sm:$0xf]
        %v422 = vld [vmem:[%s356] sm:$0xf]
        %v423 = vld [vmem:[%s356 + $0x4] sm:$0xf]
        %v424 = vld [vmem:[%s356 + $0x8] sm:$0xf]
        %v425 = vld [vmem:[%s356 + $0xc] sm:$0xf]
        %v426 = vld [vmem:[%s365] sm:$0xf]
        %v427 = vld [vmem:[%s365 + $0x4] sm:$0xf]
        %v428 = vld [vmem:[%s365 + $0x8] sm:$0xf]
        %v429 = vld [vmem:[%s365 + $0xc] sm:$0xf]
        %vm430 = vcmask 64512
        %v432 = vsel %vm430, %v418, 0
        %v435 = vsel %vm430, %v422, 0
        %437 = vmatprep.subr.bf16.mxu0 0
        %438 = vmatpush1.bf16.xpose.msra.mxu0 %v435
        %439 = vmatprep.subr.bf16.mxu0 0
        %440 = vmatpush1.bf16.xpose.msra.mxu0 0
        %441 = vmatprep.subr.bf16.mxu0 0
        %442 = vmatpush1.bf16.xpose.msra.mxu0 0
        %443 = vmatprep.subr.bf16.mxu0 0
        %444 = vmatpush1.bf16.xpose.msra.mxu0 0
        %445 = vmatprep.subr.bf16.mxu0 0
        %446 = vmatpush1.bf16.xpose.msra.mxu0 0
        %447 = vmatprep.subr.bf16.mxu0 0
        %448 = vmatpush1.bf16.xpose.msra.mxu0 0
        %449 = vmatprep.subr.bf16.mxu0 0
        %450 = vmatpush1.bf16.xpose.msra.mxu0 0
        %451 = vmatprep.subr.bf16.mxu0 0
        %452 = vmatpush1.bf16.xpose.msra.mxu0 0
        %453 = vmatprep.subr.bf16.mxu0 0
        %454 = vmatpush1.bf16.xpose.msra.mxu0 0
        %455 = vmatprep.subr.bf16.mxu0 0
        %456 = vmatpush1.bf16.xpose.msra.mxu0 0
        %457 = vmatprep.subr.bf16.mxu0 0
        %458 = vmatpush1.bf16.xpose.msra.mxu0 0
        %459 = vmatprep.subr.bf16.mxu0 0
        %460 = vmatpush1.bf16.xpose.msra.mxu0 0
        %461 = vmatprep.subr.bf16.mxu0 0
        %462 = vmatpush1.bf16.xpose.msra.mxu0 0
        %463 = vmatprep.subr.bf16.mxu0 0
        %464 = vmatpush1.bf16.xpose.msra.mxu0 0
        %465 = vmatprep.subr.bf16.mxu0 0
        %466 = vmatpush1.bf16.xpose.msra.mxu0 0
        %467 = vmatprep.subr.bf16.mxu0 0
        %468 = vmatpush1.bf16.xpose.msra.mxu0 0
        %469 = vmatprep.mubr.bf16.mxu0 0
        %470 = vmatmul.mubr.bf16.gmra.mrb[0].mxu0 %v432
        %v471 = vpop.f32.mrb[0].mxu0
        %v472 = vadd.f32 0.0, %v471
        %v473 = vpop.f32.mrb[0].mxu0
        %v474 = vpop.f32.mrb[0].mxu0
        %v475 = vpop.f32.mrb[0].mxu0
        %476 = vdwg.mxu0
        %v478 = vsel %vm430, %v419, 0
        %v481 = vsel %vm430, %v423, 0
        %483 = vmatprep.subr.bf16.mxu0 0
        %484 = vmatpush1.bf16.xpose.msra.mxu0 %v481
        %485 = vmatprep.subr.bf16.mxu0 0
        %486 = vmatpush1.bf16.xpose.msra.mxu0 0
        %487 = vmatprep.subr.bf16.mxu0 0
        %488 = vmatpush1.bf16.xpose.msra.mxu0 0
        %489 = vmatprep.subr.bf16.mxu0 0
        %490 = vmatpush1.bf16.xpose.msra.mxu0 0
        %491 = vmatprep.subr.bf16.mxu0 0
        %492 = vmatpush1.bf16.xpose.msra.mxu0 0
        %493 = vmatprep.subr.bf16.mxu0 0
        %494 = vmatpush1.bf16.xpose.msra.mxu0 0
        %495 = vmatprep.subr.bf16.mxu0 0
        %496 = vmatpush1.bf16.xpose.msra.mxu0 0
        %497 = vmatprep.subr.bf16.mxu0 0
        %498 = vmatpush1.bf16.xpose.msra.mxu0 0
        %499 = vmatprep.subr.bf16.mxu0 0
        %500 = vmatpush1.bf16.xpose.msra.mxu0 0
        %501 = vmatprep.subr.bf16.mxu0 0
        %502 = vmatpush1.bf16.xpose.msra.mxu0 0
        %503 = vmatprep.subr.bf16.mxu0 0
        %504 = vmatpush1.bf16.xpose.msra.mxu0 0
        %505 = vmatprep.subr.bf16.mxu0 0
        %506 = vmatpush1.bf16.xpose.msra.mxu0 0
        %507 = vmatprep.subr.bf16.mxu0 0
        %508 = vmatpush1.bf16.xpose.msra.mxu0 0
        %509 = vmatprep.subr.bf16.mxu0 0
        %510 = vmatpush1.bf16.xpose.msra.mxu0 0
        %511 = vmatprep.subr.bf16.mxu0 0
        %512 = vmatpush1.bf16.xpose.msra.mxu0 0
        %513 = vmatprep.subr.bf16.mxu0 0
        %514 = vmatpush1.bf16.xpose.msra.mxu0 0
        %515 = vmatprep.mubr.bf16.mxu0 0
        %516 = vmatmul.mubr.bf16.gmra.mrb[0].mxu0 %v478
        %v517 = vpop.f32.mrb[0].mxu0
        %v518 = vadd.f32 0.0, %v517
        %v519 = vpop.f32.mrb[0].mxu0
        %v520 = vpop.f32.mrb[0].mxu0
        %v521 = vpop.f32.mrb[0].mxu0
        %522 = vdwg.mxu0
        %v524 = vsel %vm430, %v420, 0
        %v527 = vsel %vm430, %v424, 0
        %529 = vmatprep.subr.bf16.mxu0 0
        %530 = vmatpush1.bf16.xpose.msra.mxu0 %v527
        %531 = vmatprep.subr.bf16.mxu0 0
        %532 = vmatpush1.bf16.xpose.msra.mxu0 0
        %533 = vmatprep.subr.bf16.mxu0 0
        %534 = vmatpush1.bf16.xpose.msra.mxu0 0
        %535 = vmatprep.subr.bf16.mxu0 0
        %536 = vmatpush1.bf16.xpose.msra.mxu0 0
        %537 = vmatprep.subr.bf16.mxu0 0
        %538 = vmatpush1.bf16.xpose.msra.mxu0 0
        %539 = vmatprep.subr.bf16.mxu0 0
        %540 = vmatpush1.bf16.xpose.msra.mxu0 0
        %541 = vmatprep.subr.bf16.mxu0 0
        %542 = vmatpush1.bf16.xpose.msra.mxu0 0
        %543 = vmatprep.subr.bf16.mxu0 0
        %544 = vmatpush1.bf16.xpose.msra.mxu0 0
        %545 = vmatprep.subr.bf16.mxu0 0
        %546 = vmatpush1.bf16.xpose.msra.mxu0 0
        %547 = vmatprep.subr.bf16.mxu0 0
        %548 = vmatpush1.bf16.xpose.msra.mxu0 0
        %549 = vmatprep.subr.bf16.mxu0 0
        %550 = vmatpush1.bf16.xpose.msra.mxu0 0
        %551 = vmatprep.subr.bf16.mxu0 0
        %552 = vmatpush1.bf16.xpose.msra.mxu0 0
        %553 = vmatprep.subr.bf16.mxu0 0
        %554 = vmatpush1.bf16.xpose.msra.mxu0 0
        %555 = vmatprep.subr.bf16.mxu0 0
        %556 = vmatpush1.bf16.xpose.msra.mxu0 0
        %557 = vmatprep.subr.bf16.mxu0 0
        %558 = vmatpush1.bf16.xpose.msra.mxu0 0
        %559 = vmatprep.subr.bf16.mxu0 0
        %560 = vmatpush1.bf16.xpose.msra.mxu0 0
        %561 = vmatprep.mubr.bf16.mxu0 0
        %562 = vmatmul.mubr.bf16.gmra.mrb[0].mxu0 %v524
        %v563 = vpop.f32.mrb[0].mxu0
        %v564 = vadd.f32 0.0, %v563
        %v565 = vpop.f32.mrb[0].mxu0
        %v566 = vpop.f32.mrb[0].mxu0
        %v567 = vpop.f32.mrb[0].mxu0
        %568 = vdwg.mxu0
        %v570 = vsel %vm430, %v421, 0
        %v573 = vsel %vm430, %v425, 0
        %575 = vmatprep.subr.bf16.mxu0 0
        %576 = vmatpush1.bf16.xpose.msra.mxu0 %v573
        %577 = vmatprep.subr.bf16.mxu0 0
        %578 = vmatpush1.bf16.xpose.msra.mxu0 0
        %579 = vmatprep.subr.bf16.mxu0 0
        %580 = vmatpush1.bf16.xpose.msra.mxu0 0
        %581 = vmatprep.subr.bf16.mxu0 0
        %582 = vmatpush1.bf16.xpose.msra.mxu0 0
        %583 = vmatprep.subr.bf16.mxu0 0
        %584 = vmatpush1.bf16.xpose.msra.mxu0 0
        %585 = vmatprep.subr.bf16.mxu0 0
        %586 = vmatpush1.bf16.xpose.msra.mxu0 0
        %587 = vmatprep.subr.bf16.mxu0 0
        %588 = vmatpush1.bf16.xpose.msra.mxu0 0
        %589 = vmatprep.subr.bf16.mxu0 0
        %590 = vmatpush1.bf16.xpose.msra.mxu0 0
        %591 = vmatprep.subr.bf16.mxu0 0
        %592 = vmatpush1.bf16.xpose.msra.mxu0 0
        %593 = vmatprep.subr.bf16.mxu0 0
        %594 = vmatpush1.bf16.xpose.msra.mxu0 0
        %595 = vmatprep.subr.bf16.mxu0 0
        %596 = vmatpush1.bf16.xpose.msra.mxu0 0
        %597 = vmatprep.subr.bf16.mxu0 0
        %598 = vmatpush1.bf16.xpose.msra.mxu0 0
        %599 = vmatprep.subr.bf16.mxu0 0
        %600 = vmatpush1.bf16.xpose.msra.mxu0 0
        %601 = vmatprep.subr.bf16.mxu0 0
        %602 = vmatpush1.bf16.xpose.msra.mxu0 0
        %603 = vmatprep.subr.bf16.mxu0 0
        %604 = vmatpush1.bf16.xpose.msra.mxu0 0
        %605 = vmatprep.subr.bf16.mxu0 0
        %606 = vmatpush1.bf16.xpose.msra.mxu0 0
        %607 = vmatprep.mubr.bf16.mxu0 0
        %608 = vmatmul.mubr.bf16.gmra.mrb[0].mxu0 %v570
        %v609 = vpop.f32.mrb[0].mxu0
        %v610 = vadd.f32 0.0, %v609
        %v611 = vpop.f32.mrb[0].mxu0
        %v612 = vpop.f32.mrb[0].mxu0
        %v613 = vpop.f32.mrb[0].mxu0
        %614 = vdwg.mxu0
        %v615 = vsel %vm430, %v472, -inf
        %616 = vmax.xlane.f32.xlu0 %v615
        %v617 = vpop.xlane.xlu0 %616
        %v618 = vsel %vm430, %v518, -inf
        %619 = vmax.xlane.f32.xlu0 %v618
        %v620 = vpop.xlane.xlu0 %619
        %v621 = vsel %vm430, %v564, -inf
        %622 = vmax.xlane.f32.xlu0 %v621
        %v623 = vpop.xlane.xlu0 %622
        %v624 = vsel %vm430, %v610, -inf
        %625 = vmax.xlane.f32.xlu0 %v624
        %v626 = vpop.xlane.xlu0 %625
        %v627 = vsub.f32 %v472, %v617
        %v628 = vsub.f32 %v518, %v620
        %v629 = vsub.f32 %v564, %v623
        %v630 = vsub.f32 %v610, %v626
        %v631 = vmul.f32 %v627, 1.442695
        %v632 = vpow.pop %v631
        %v633 = vmul.f32 %v628, 1.442695
        %v634 = vpow.pop %v633
        %v635 = vmul.f32 %v629, 1.442695
        %v636 = vpow.pop %v635
        %v637 = vmul.f32 %v630, 1.442695
        %v638 = vpow.pop %v637
        %v639 = vsel %vm430, %v632, 0.0
        %640 = vadd.xlane.f32.xlu0 %v639
        %v641 = vpop.xlane.xlu0 %640
        %v642 = vsel %vm430, %v634, 0.0
        %643 = vadd.xlane.f32.xlu0 %v642
        %v644 = vpop.xlane.xlu0 %643
        %v645 = vsel %vm430, %v636, 0.0
        %646 = vadd.xlane.f32.xlu0 %v645
        %v647 = vpop.xlane.xlu0 %646
        %v648 = vsel %vm430, %v638, 0.0
        %649 = vadd.xlane.f32.xlu0 %v648
        %v650 = vpop.xlane.xlu0 %649
        %v651 = vrcp.pop %v641
        %v652 = vrcp.pop %v644
        %v653 = vrcp.pop %v647
        %v654 = vrcp.pop %v650
        %v655 = vmul.f32 %v641, %v651
        %v656 = vmul.f32 %v644, %v652
        %v657 = vmul.f32 %v647, %v653
        %v658 = vmul.f32 %v650, %v654
        %v659 = vsub.f32 2.0, %v655
        %v660 = vsub.f32 2.0, %v656
        %v661 = vsub.f32 2.0, %v657
        %v662 = vsub.f32 2.0, %v658
        %v663 = vmul.f32 %v651, %v659
        %v664 = vmul.f32 %v652, %v660
        %v665 = vmul.f32 %v653, %v661
        %v666 = vmul.f32 %v654, %v662
        %v667 = vmul.f32 %v632, %v663
        %v668 = vmul.f32 %v634, %v664
        %v669 = vmul.f32 %v636, %v665
        %v670 = vmul.f32 %v638, %v666
        %671 = vst.msk [vmem:[%s412] sm:$0xff] %vm430, %v667
        %672 = vst.msk [vmem:[%s412 + $0x8] sm:$0xff] %vm430, %v668
        %673 = vst.msk [vmem:[%s412 + $0x10] sm:$0xff] %vm430, %v669
        %674 = vst.msk [vmem:[%s412 + $0x18] sm:$0xff] %vm430, %v670
        %v675 = vpack.c.bf16 %v667, %v667
        %v676 = vpack.c.bf16 %v668, %v668
        %v677 = vpack.c.bf16 %v669, %v669
        %v678 = vpack.c.bf16 %v670, %v670
        %v680 = vsel %vm430, %v675, 0
        %vm682 = vcmask 1043456
        %v684 = vsel %vm682, %v426, 0
        %686 = vmatprep.subr.bf16.mxu0 0
        %687 = vmatpush1.bf16.msra.mxu0 %v684
        %688 = vmatprep.subr.bf16.mxu0 0
        %689 = vmatpush1.bf16.msra.mxu0 0
        %690 = vmatprep.subr.bf16.mxu0 0
        %691 = vmatpush1.bf16.msra.mxu0 0
        %692 = vmatprep.subr.bf16.mxu0 0
        %693 = vmatpush1.bf16.msra.mxu0 0
        %694 = vmatprep.subr.bf16.mxu0 0
        %695 = vmatpush1.bf16.msra.mxu0 0
        %696 = vmatprep.subr.bf16.mxu0 0
        %697 = vmatpush1.bf16.msra.mxu0 0
        %698 = vmatprep.subr.bf16.mxu0 0
        %699 = vmatpush1.bf16.msra.mxu0 0
        %700 = vmatprep.subr.bf16.mxu0 0
        %701 = vmatpush1.bf16.msra.mxu0 0
        %702 = vmatprep.subr.bf16.mxu0 0
        %703 = vmatpush1.bf16.msra.mxu0 0
        %704 = vmatprep.subr.bf16.mxu0 0
        %705 = vmatpush1.bf16.msra.mxu0 0
        %706 = vmatprep.subr.bf16.mxu0 0
        %707 = vmatpush1.bf16.msra.mxu0 0
        %708 = vmatprep.subr.bf16.mxu0 0
        %709 = vmatpush1.bf16.msra.mxu0 0
        %710 = vmatprep.subr.bf16.mxu0 0
        %711 = vmatpush1.bf16.msra.mxu0 0
        %712 = vmatprep.subr.bf16.mxu0 0
        %713 = vmatpush1.bf16.msra.mxu0 0
        %714 = vmatprep.subr.bf16.mxu0 0
        %715 = vmatpush1.bf16.msra.mxu0 0
        %716 = vmatprep.subr.bf16.mxu0 0
        %717 = vmatpush1.bf16.msra.mxu0 0
        %718 = vmatprep.mubr.bf16.mxu0 0
        %719 = vmatmul.mubr.bf16.gmra.mrb[0].mxu0 %v680
        %v720 = vpop.f32.mrb[0].mxu0
        %v721 = vadd.f32 0.0, %v720
        %v722 = vpop.f32.mrb[0].mxu0
        %v723 = vpop.f32.mrb[0].mxu0
        %v724 = vpop.f32.mrb[0].mxu0
        %725 = vdwg.mxu0
        %v727 = vsel %vm430, %v676, 0
        %v730 = vsel %vm682, %v427, 0
        %732 = vmatprep.subr.bf16.mxu0 0
        %733 = vmatpush1.bf16.msra.mxu0 %v730
        %734 = vmatprep.subr.bf16.mxu0 0
        %735 = vmatpush1.bf16.msra.mxu0 0
        %736 = vmatprep.subr.bf16.mxu0 0
        %737 = vmatpush1.bf16.msra.mxu0 0
        %738 = vmatprep.subr.bf16.mxu0 0
        %739 = vmatpush1.bf16.msra.mxu0 0
        %740 = vmatprep.subr.bf16.mxu0 0
        %741 = vmatpush1.bf16.msra.mxu0 0
        %742 = vmatprep.subr.bf16.mxu0 0
        %743 = vmatpush1.bf16.msra.mxu0 0
        %744 = vmatprep.subr.bf16.mxu0 0
        %745 = vmatpush1.bf16.msra.mxu0 0
        %746 = vmatprep.subr.bf16.mxu0 0
        %747 = vmatpush1.bf16.msra.mxu0 0
        %748 = vmatprep.subr.bf16.mxu0 0
        %749 = vmatpush1.bf16.msra.mxu0 0
        %750 = vmatprep.subr.bf16.mxu0 0
        %751 = vmatpush1.bf16.msra.mxu0 0
        %752 = vmatprep.subr.bf16.mxu0 0
        %753 = vmatpush1.bf16.msra.mxu0 0
        %754 = vmatprep.subr.bf16.mxu0 0
        %755 = vmatpush1.bf16.msra.mxu0 0
        %756 = vmatprep.subr.bf16.mxu0 0
        %757 = vmatpush1.bf16.msra.mxu0 0
        %758 = vmatprep.subr.bf16.mxu0 0
        %759 = vmatpush1.bf16.msra.mxu0 0
        %760 = vmatprep.subr.bf16.mxu0 0
        %761 = vmatpush1.bf16.msra.mxu0 0
        %762 = vmatprep.subr.bf16.mxu0 0
        %763 = vmatpush1.bf16.msra.mxu0 0
        %764 = vmatprep.mubr.bf16.mxu0 0
        %765 = vmatmul.mubr.bf16.gmra.mrb[0].mxu0 %v727
        %v766 = vpop.f32.mrb[0].mxu0
        %v767 = vadd.f32 0.0, %v766
        %v768 = vpop.f32.mrb[0].mxu0
        %v769 = vpop.f32.mrb[0].mxu0
        %v770 = vpop.f32.mrb[0].mxu0
        %771 = vdwg.mxu0
        %v773 = vsel %vm430, %v677, 0
        %v776 = vsel %vm682, %v428, 0
        %778 = vmatprep.subr.bf16.mxu0 0
        %779 = vmatpush1.bf16.msra.mxu0 %v776
        %780 = vmatprep.subr.bf16.mxu0 0
        %781 = vmatpush1.bf16.msra.mxu0 0
        %782 = vmatprep.subr.bf16.mxu0 0
        %783 = vmatpush1.bf16.msra.mxu0 0
        %784 = vmatprep.subr.bf16.mxu0 0
        %785 = vmatpush1.bf16.msra.mxu0 0
        %786 = vmatprep.subr.bf16.mxu0 0
        %787 = vmatpush1.bf16.msra.mxu0 0
        %788 = vmatprep.subr.bf16.mxu0 0
        %789 = vmatpush1.bf16.msra.mxu0 0
        %790 = vmatprep.subr.bf16.mxu0 0
        %791 = vmatpush1.bf16.msra.mxu0 0
        %792 = vmatprep.subr.bf16.mxu0 0
        %793 = vmatpush1.bf16.msra.mxu0 0
        %794 = vmatprep.subr.bf16.mxu0 0
        %795 = vmatpush1.bf16.msra.mxu0 0
        %796 = vmatprep.subr.bf16.mxu0 0
        %797 = vmatpush1.bf16.msra.mxu0 0
        %798 = vmatprep.subr.bf16.mxu0 0
        %799 = vmatpush1.bf16.msra.mxu0 0
        %800 = vmatprep.subr.bf16.mxu0 0
        %801 = vmatpush1.bf16.msra.mxu0 0
        %802 = vmatprep.subr.bf16.mxu0 0
        %803 = vmatpush1.bf16.msra.mxu0 0
        %804 = vmatprep.subr.bf16.mxu0 0
        %805 = vmatpush1.bf16.msra.mxu0 0
        %806 = vmatprep.subr.bf16.mxu0 0
        %807 = vmatpush1.bf16.msra.mxu0 0
        %808 = vmatprep.subr.bf16.mxu0 0
        %809 = vmatpush1.bf16.msra.mxu0 0
        %810 = vmatprep.mubr.bf16.mxu0 0
        %811 = vmatmul.mubr.bf16.gmra.mrb[0].mxu0 %v773
        %v812 = vpop.f32.mrb[0].mxu0
        %v813 = vadd.f32 0.0, %v812
        %v814 = vpop.f32.mrb[0].mxu0
        %v815 = vpop.f32.mrb[0].mxu0
        %v816 = vpop.f32.mrb[0].mxu0
        %817 = vdwg.mxu0
        %v819 = vsel %vm430, %v678, 0
        %v822 = vsel %vm682, %v429, 0
        %824 = vmatprep.subr.bf16.mxu0 0
        %825 = vmatpush1.bf16.msra.mxu0 %v822
        %826 = vmatprep.subr.bf16.mxu0 0
        %827 = vmatpush1.bf16.msra.mxu0 0
        %828 = vmatprep.subr.bf16.mxu0 0
        %829 = vmatpush1.bf16.msra.mxu0 0
        %830 = vmatprep.subr.bf16.mxu0 0
        %831 = vmatpush1.bf16.msra.mxu0 0
        %832 = vmatprep.subr.bf16.mxu0 0
        %833 = vmatpush1.bf16.msra.mxu0 0
        %834 = vmatprep.subr.bf16.mxu0 0
        %835 = vmatpush1.bf16.msra.mxu0 0
        %836 = vmatprep.subr.bf16.mxu0 0
        %837 = vmatpush1.bf16.msra.mxu0 0
        %838 = vmatprep.subr.bf16.mxu0 0
        %839 = vmatpush1.bf16.msra.mxu0 0
        %840 = vmatprep.subr.bf16.mxu0 0
        %841 = vmatpush1.bf16.msra.mxu0 0
        %842 = vmatprep.subr.bf16.mxu0 0
        %843 = vmatpush1.bf16.msra.mxu0 0
        %844 = vmatprep.subr.bf16.mxu0 0
        %845 = vmatpush1.bf16.msra.mxu0 0
        %846 = vmatprep.subr.bf16.mxu0 0
        %847 = vmatpush1.bf16.msra.mxu0 0
        %848 = vmatprep.subr.bf16.mxu0 0
        %849 = vmatpush1.bf16.msra.mxu0 0
        %850 = vmatprep.subr.bf16.mxu0 0
        %851 = vmatpush1.bf16.msra.mxu0 0
        %852 = vmatprep.subr.bf16.mxu0 0
        %853 = vmatpush1.bf16.msra.mxu0 0
        %854 = vmatprep.subr.bf16.mxu0 0
        %855 = vmatpush1.bf16.msra.mxu0 0
        %856 = vmatprep.mubr.bf16.mxu0 0
        %857 = vmatmul.mubr.bf16.gmra.mrb[0].mxu0 %v819
        %v858 = vpop.f32.mrb[0].mxu0
        %v859 = vadd.f32 0.0, %v858
        %v860 = vpop.f32.mrb[0].mxu0
        %v861 = vpop.f32.mrb[0].mxu0
        %v862 = vpop.f32.mrb[0].mxu0
        %863 = vdwg.mxu0
        %s864 = smul.u32 %s38, 4
        %s865 = smul.addr %s864, 4
        %s866 = scalar_lea.vmem [#allocation9], %s865
        %v867 = vld [vmem:[%s866] sm:$0xf]
        %v868 = vld [vmem:[%s866 + $0x4] sm:$0xf]
        %v869 = vld [vmem:[%s866 + $0x8] sm:$0xf]
        %v870 = vld [vmem:[%s866 + $0xc] sm:$0xf]
        %v871 = vpack.c.bf16 %v721, %v721
        %v872 = vpack.c.bf16 %v767, %v767
        %v873 = vpack.c.bf16 %v813, %v813
        %v874 = vpack.c.bf16 %v859, %v859
        %v876 = vsel %vm430, %v871, 0
        %v879 = vsel %vm682, %v867, 0
        %881 = vmatprep.subr.bf16.mxu0 0
        %882 = vmatpush1.bf16.msra.mxu0 %v879
        %883 = vmatprep.subr.bf16.mxu0 0
        %884 = vmatpush1.bf16.msra.mxu0 0
        %885 = vmatprep.subr.bf16.mxu0 0
        %886 = vmatpush1.bf16.msra.mxu0 0
        %887 = vmatprep.subr.bf16.mxu0 0
        %888 = vmatpush1.bf16.msra.mxu0 0
        %889 = vmatprep.subr.bf16.mxu0 0
        %890 = vmatpush1.bf16.msra.mxu0 0
        %891 = vmatprep.subr.bf16.mxu0 0
        %892 = vmatpush1.bf16.msra.mxu0 0
        %893 = vmatprep.subr.bf16.mxu0 0
        %894 = vmatpush1.bf16.msra.mxu0 0
        %895 = vmatprep.subr.bf16.mxu0 0
        %896 = vmatpush1.bf16.msra.mxu0 0
        %897 = vmatprep.subr.bf16.mxu0 0
        %898 = vmatpush1.bf16.msra.mxu0 0
        %899 = vmatprep.subr.bf16.mxu0 0
        %900 = vmatpush1.bf16.msra.mxu0 0
        %901 = vmatprep.subr.bf16.mxu0 0
        %902 = vmatpush1.bf16.msra.mxu0 0
        %903 = vmatprep.subr.bf16.mxu0 0
        %904 = vmatpush1.bf16.msra.mxu0 0
        %905 = vmatprep.subr.bf16.mxu0 0
        %906 = vmatpush1.bf16.msra.mxu0 0
        %907 = vmatprep.subr.bf16.mxu0 0
        %908 = vmatpush1.bf16.msra.mxu0 0
        %909 = vmatprep.subr.bf16.mxu0 0
        %910 = vmatpush1.bf16.msra.mxu0 0
        %911 = vmatprep.subr.bf16.mxu0 0
        %912 = vmatpush1.bf16.msra.mxu0 0
        %913 = vmatprep.mubr.bf16.mxu0 0
        %914 = vmatmul.mubr.bf16.gmra.mrb[0].mxu0 %v876
        %v915 = vpop.f32.mrb[0].mxu0
        %v916 = vadd.f32 0.0, %v915
        %v917 = vpop.f32.mrb[0].mxu0
        %v918 = vpop.f32.mrb[0].mxu0
        %v919 = vpop.f32.mrb[0].mxu0
        %920 = vdwg.mxu0
        %v922 = vsel %vm430, %v872, 0
        %v925 = vsel %vm682, %v868, 0
        %927 = vmatprep.subr.bf16.mxu0 0
        %928 = vmatpush1.bf16.msra.mxu0 %v925
        %929 = vmatprep.subr.bf16.mxu0 0
        %930 = vmatpush1.bf16.msra.mxu0 0
        %931 = vmatprep.subr.bf16.mxu0 0
        %932 = vmatpush1.bf16.msra.mxu0 0
        %933 = vmatprep.subr.bf16.mxu0 0
        %934 = vmatpush1.bf16.msra.mxu0 0
        %935 = vmatprep.subr.bf16.mxu0 0
        %936 = vmatpush1.bf16.msra.mxu0 0
        %937 = vmatprep.subr.bf16.mxu0 0
        %938 = vmatpush1.bf16.msra.mxu0 0
        %939 = vmatprep.subr.bf16.mxu0 0
        %940 = vmatpush1.bf16.msra.mxu0 0
        %941 = vmatprep.subr.bf16.mxu0 0
        %942 = vmatpush1.bf16.msra.mxu0 0
        %943 = vmatprep.subr.bf16.mxu0 0
        %944 = vmatpush1.bf16.msra.mxu0 0
        %945 = vmatprep.subr.bf16.mxu0 0
        %946 = vmatpush1.bf16.msra.mxu0 0
        %947 = vmatprep.subr.bf16.mxu0 0
        %948 = vmatpush1.bf16.msra.mxu0 0
        %949 = vmatprep.subr.bf16.mxu0 0
        %950 = vmatpush1.bf16.msra.mxu0 0
        %951 = vmatprep.subr.bf16.mxu0 0
        %952 = vmatpush1.bf16.msra.mxu0 0
        %953 = vmatprep.subr.bf16.mxu0 0
        %954 = vmatpush1.bf16.msra.mxu0 0
        %955 = vmatprep.subr.bf16.mxu0 0
        %956 = vmatpush1.bf16.msra.mxu0 0
        %957 = vmatprep.subr.bf16.mxu0 0
        %958 = vmatpush1.bf16.msra.mxu0 0
        %959 = vmatprep.mubr.bf16.mxu0 0
        %960 = vmatmul.mubr.bf16.gmra.mrb[0].mxu0 %v922
        %v961 = vpop.f32.mrb[0].mxu0
        %v962 = vadd.f32 0.0, %v961
        %v963 = vpop.f32.mrb[0].mxu0
        %v964 = vpop.f32.mrb[0].mxu0
        %v965 = vpop.f32.mrb[0].mxu0
        %966 = vdwg.mxu0
        %v968 = vsel %vm430, %v873, 0
        %v971 = vsel %vm682, %v869, 0
        %973 = vmatprep.subr.bf16.mxu0 0
        %974 = vmatpush1.bf16.msra.mxu0 %v971
        %975 = vmatprep.subr.bf16.mxu0 0
        %976 = vmatpush1.bf16.msra.mxu0 0
        %977 = vmatprep.subr.bf16.mxu0 0
        %978 = vmatpush1.bf16.msra.mxu0 0
        %979 = vmatprep.subr.bf16.mxu0 0
        %980 = vmatpush1.bf16.msra.mxu0 0
        %981 = vmatprep.subr.bf16.mxu0 0
        %982 = vmatpush1.bf16.msra.mxu0 0
        %983 = vmatprep.subr.bf16.mxu0 0
        %984 = vmatpush1.bf16.msra.mxu0 0
        %985 = vmatprep.subr.bf16.mxu0 0
        %986 = vmatpush1.bf16.msra.mxu0 0
        %987 = vmatprep.subr.bf16.mxu0 0
        %988 = vmatpush1.bf16.msra.mxu0 0
        %989 = vmatprep.subr.bf16.mxu0 0
        %990 = vmatpush1.bf16.msra.mxu0 0
        %991 = vmatprep.subr.bf16.mxu0 0
        %992 = vmatpush1.bf16.msra.mxu0 0
        %993 = vmatprep.subr.bf16.mxu0 0
        %994 = vmatpush1.bf16.msra.mxu0 0
        %995 = vmatprep.subr.bf16.mxu0 0
        %996 = vmatpush1.bf16.msra.mxu0 0
        %997 = vmatprep.subr.bf16.mxu0 0
        %998 = vmatpush1.bf16.msra.mxu0 0
        %999 = vmatprep.subr.bf16.mxu0 0
        %1000 = vmatpush1.bf16.msra.mxu0 0
        %1001 = vmatprep.subr.bf16.mxu0 0
        %1002 = vmatpush1.bf16.msra.mxu0 0
        %1003 = vmatprep.subr.bf16.mxu0 0
        %1004 = vmatpush1.bf16.msra.mxu0 0
        %1005 = vmatprep.mubr.bf16.mxu0 0
        %1006 = vmatmul.mubr.bf16.gmra.mrb[0].mxu0 %v968
        %v1007 = vpop.f32.mrb[0].mxu0
        %v1008 = vadd.f32 0.0, %v1007
        %v1009 = vpop.f32.mrb[0].mxu0
        %v1010 = vpop.f32.mrb[0].mxu0
        %v1011 = vpop.f32.mrb[0].mxu0
        %1012 = vdwg.mxu0
        %v1014 = vsel %vm430, %v874, 0
        %v1017 = vsel %vm682, %v870, 0
        %1019 = vmatprep.subr.bf16.mxu0 0
        %1020 = vmatpush1.bf16.msra.mxu0 %v1017
        %1021 = vmatprep.subr.bf16.mxu0 0
        %1022 = vmatpush1.bf16.msra.mxu0 0
        %1023 = vmatprep.subr.bf16.mxu0 0
        %1024 = vmatpush1.bf16.msra.mxu0 0
        %1025 = vmatprep.subr.bf16.mxu0 0
        %1026 = vmatpush1.bf16.msra.mxu0 0
        %1027 = vmatprep.subr.bf16.mxu0 0
        %1028 = vmatpush1.bf16.msra.mxu0 0
        %1029 = vmatprep.subr.bf16.mxu0 0
        %1030 = vmatpush1.bf16.msra.mxu0 0
        %1031 = vmatprep.subr.bf16.mxu0 0
        %1032 = vmatpush1.bf16.msra.mxu0 0
        %1033 = vmatprep.subr.bf16.mxu0 0
        %1034 = vmatpush1.bf16.msra.mxu0 0
        %1035 = vmatprep.subr.bf16.mxu0 0
        %1036 = vmatpush1.bf16.msra.mxu0 0
        %1037 = vmatprep.subr.bf16.mxu0 0
        %1038 = vmatpush1.bf16.msra.mxu0 0
        %1039 = vmatprep.subr.bf16.mxu0 0
        %1040 = vmatpush1.bf16.msra.mxu0 0
        %1041 = vmatprep.subr.bf16.mxu0 0
        %1042 = vmatpush1.bf16.msra.mxu0 0
        %1043 = vmatprep.subr.bf16.mxu0 0
        %1044 = vmatpush1.bf16.msra.mxu0 0
        %1045 = vmatprep.subr.bf16.mxu0 0
        %1046 = vmatpush1.bf16.msra.mxu0 0
        %1047 = vmatprep.subr.bf16.mxu0 0
        %1048 = vmatpush1.bf16.msra.mxu0 0
        %1049 = vmatprep.subr.bf16.mxu0 0
        %1050 = vmatpush1.bf16.msra.mxu0 0
        %1051 = vmatprep.mubr.bf16.mxu0 0
        %1052 = vmatmul.mubr.bf16.gmra.mrb[0].mxu0 %v1014
        %v1053 = vpop.f32.mrb[0].mxu0
        %v1054 = vadd.f32 0.0, %v1053
        %v1055 = vpop.f32.mrb[0].mxu0
        %v1056 = vpop.f32.mrb[0].mxu0
        %v1057 = vpop.f32.mrb[0].mxu0
        %1058 = vdwg.mxu0
        %vm1059 = vcmask 261120
        %v1060 = vsel %vm1059, %v916, 0.0
        %v1061 = vsel %vm1059, %v962, 0.0
        %v1062 = vadd.f32 %v1060, %v1061
        %v1063 = vsel %vm1059, %v1008, 0.0
        %v1064 = vadd.f32 %v1062, %v1063
        %v1065 = vsel %vm1059, %v1054, 0.0
        %v1066 = vadd.f32 %v1064, %v1065
        %p1067 = scmp.eq.s32.totalorder %s38, 0
        // Predicated region
        $region57: #{tpu_custom_call.1} parent=39 // pred_check
          %p1068 = pneg %p1067
        $region58: #{tpu_custom_call.1} parent=39 // pred_check_branch
          %1070 = sbr.rel (%p1068) target = $region60
        $region59: #{tpu_custom_call.1} parent=39 // pred_region
          %v1071 = vld [vmem:[%s4] sm:$0x1]
          %v1073 = vlaneseq
          %v1074 = vshrl.u32 %v1073, 7
          %v1075 = vsub.s32 0, %v1074
          %v1076 = vrot.slane %v1071, %v1075
          %1078 = vst.msk [vmem:[#allocation2] sm:$0xff] %vm1059, %v1076
        $region60: #{tpu_custom_call.1} parent=39 // pred_fallthru
          _
        %v1079 = vld [vmem:[#allocation2] sm:$0xff]
        %v1080 = vadd.f32 %v1079, %v1066
        %1081 = vst.msk [vmem:[#allocation2] sm:$0xff] %vm1059, %v1080
        // Predicated region
        $region61: #{tpu_custom_call.1} parent=39 // pred_check
          %p1082 = pneg %p1067
        $region62: #{tpu_custom_call.1} parent=39 // pred_check_branch
          %1084 = sbr.rel (%p1082) target = $region64
        $region63: #{tpu_custom_call.1} parent=39 // pred_region
          %v1085 = vld [vmem:[#allocation2] sm:$0xff]
          %1086 = vst.msk [vmem:[%s405] sm:$0xff] %vm1059, %v1085
        $region64: #{tpu_custom_call.1} parent=39 // pred_fallthru
          _
        %s1087 = sand.u32 %s188, 1
        %s1088 = scalar_lea.sflag [#allocation5], %s1087
        %s1089 = sand.u32 %s188, 1
        %s1090 = smul.addr %s1089, 8
        %s1091 = scalar_lea.vmem [#allocation11], %s1090
        %s1092 = sand.u32 %s218, 1
        %s1093 = scalar_lea.sflag [#allocation13], %s1092
        %s1094 = sand.u32 %s218, 1
        %s1095 = smul.addr %s1094, 32
        %s1096 = scalar_lea.vmem [#allocation12], %s1095
        // Predicated region
        $region65: #{tpu_custom_call.1} parent=39 // pred_check
          %p1097 = pneg %p198
        $region66: #{tpu_custom_call.1} parent=39 // pred_check_branch
          %1099 = sbr.rel (%p1097) target = $region68
        $region67: #{tpu_custom_call.1} parent=39 // pred_region
          %s1101 = ssub.s32 128, 128
          %1102 = vsyncadd %s1088, %s1101
          %s1103 = sadd.s32 %s37, %s36
          %s1104 = smul.addr %s1103, 128
          %s1105 = scalar_lea.hbm %s5, %s1104
          %s1107 = sshll.u32 %s1091, 4
          %s1108 = int_to_ptr.vmem [resolvable:$true] %s1107
          %1110 = dma.vmem_to_hbm [thread:$0]  %s1108, 128, %s1105, %s1088
        $region68: #{tpu_custom_call.1} parent=39 // pred_fallthru
          _
        // Predicated region
        $region69: #{tpu_custom_call.1} parent=39 // pred_check
          %p1111 = pneg %p228
        $region70: #{tpu_custom_call.1} parent=39 // pred_check_branch
          %1113 = sbr.rel (%p1111) target = $region72
        $region71: #{tpu_custom_call.1} parent=39 // pred_region
          %s1114 = smul.u32 4, %s38
          %s1116 = ssub.s32 512, 512
          %1117 = vsyncadd %s1093, %s1116
          %s1118 = sadd.s32 %s37, %s1114
          %s1119 = smul.addr %s36, 4
          %s1120 = sadd.s32 %s1118, %s1119
          %s1121 = smul.addr %s1120, 128
          %s1122 = scalar_lea.hbm %s6, %s1121
          %s1123 = sshll.u32 %s1096, 4
          %s1124 = int_to_ptr.vmem [resolvable:$true] %s1123
          %1129 = dma.vmem_to_hbm [thread:$0]  %s1124, 512, %s1122, %s1093, 128, 128, 8
        $region72: #{tpu_custom_call.1} parent=39 // pred_fallthru
          _
      $region40: #{tpu_custom_call.1} parent=5 // pred_fallthru
        _
      %p1130 = scmp.le.s32.totalorder 2, %s26
      // Predicated region
      $region73: #{tpu_custom_call.1} parent=5 // pred_check
        %p1131 = pneg %p1130
      $region74: #{tpu_custom_call.1} parent=5 // pred_check_branch
        %1133 = sbr.rel (%p1131) target = $region76
      $region75: #{tpu_custom_call.1} parent=5 // pred_region
        %s1134 = ssub.s32 %s26, 2
        // Predicated region
        $region77: #{tpu_custom_call.1} parent=75 // pred_check
          %p1135 = pneg %p204
        $region78: #{tpu_custom_call.1} parent=75 // pred_check_branch
          %1137 = sbr.rel (%p1135) target = $region80
        $region79: #{tpu_custom_call.1} parent=75 // pred_region
          %s1138 = sand.u32 %s189, 1
          %s1139 = scalar_lea.sflag [#allocation5], %s1138
          %s1140 = sand.u32 %s189, 1
          %s1141 = smul.addr %s1140, 8
          %s1142 = scalar_lea.vmem [#allocation11], %s1141
          %1143 = dma.done %s1139, 128
        $region80: #{tpu_custom_call.1} parent=75 // pred_fallthru
          _
        // Predicated region
        $region81: #{tpu_custom_call.1} parent=75 // pred_check
          %p1144 = pneg %p234
        $region82: #{tpu_custom_call.1} parent=75 // pred_check_branch
          %1146 = sbr.rel (%p1144) target = $region84
        $region83: #{tpu_custom_call.1} parent=75 // pred_region
          %s1147 = sand.u32 %s219, 1
          %s1148 = scalar_lea.sflag [#allocation13], %s1147
          %s1149 = sand.u32 %s219, 1
          %s1150 = smul.addr %s1149, 32
          %s1151 = scalar_lea.vmem [#allocation12], %s1150
          %1152 = dma.done %s1148, 512
        $region84: #{tpu_custom_call.1} parent=75 // pred_fallthru
          _
      $region76: #{tpu_custom_call.1} parent=5 // pred_fallthru
        _
    $region6: #{tpu_custom_call.1} parent=1 // loop_footer
      %s30 = sadd.s32 1, %s26
    $region7: #{tpu_custom_call.1} parent=1 // loop_footer_branch
      %25 = sbr.rel target = $region3
    $region8: #{tpu_custom_call.1} parent=1 // loop_exit
      _
    %1153 = vsyncpa [#allocation4], 1
    %s1154 = scalar_lea.sflag [#allocation4], 1
    %1155 = vsyncpa %s1154, 1
    %1156 = vsyncpa [#allocation7], 1
    %s1157 = scalar_lea.sflag [#allocation7], 1
    %1158 = vsyncpa %s1157, 1
    %1159 = vsyncpa [#allocation10], 1
    %1160 = vsyncpa [#allocation5], 1
    %s1161 = scalar_lea.sflag [#allocation5], 1
    %1162 = vsyncpa %s1161, 1
    %1163 = vsyncpa [#allocation13], 1
    %s1164 = scalar_lea.sflag [#allocation13], 1
    %1165 = vsyncpa %s1164, 1

</llo_original>
